<compile_context>
chip_gen: v6e
topology: v6e:2x2x1
jax: 0.10.0
libtpu: 0.0.40
codegen_flags: <defaults>
</compile_context>

<pallas_src>
import jax
import jax.numpy as jnp
from jax.experimental import pallas as pl
from jax.experimental.pallas import tpu as pltpu


IN_FEATURES = 12      # nn.Linear(12, f)
_LANE = 128
_SUBLANE = 8
_MAX_TB = 512         # batch-tile target (big tiles ~= HBM roofline)
_MAX_TF = 512         # feature-tile cap for very large f


def _round_up(n, m):
    return ((n + m - 1) // m) * m


def _linear_kernel(x_ref, w_ref, b_ref, o_ref):
    # x_ref: (TB, K)      activations tile
    # w_ref: (K, TF)      weight, lane-dense, MXU-native (K, N) RHS
    # b_ref: (1, TF)      bias
    # o_ref: (TB, TF)     output tile (stores masked at ragged edges by Pallas)
    acc = jnp.dot(x_ref[...], w_ref[...], preferred_element_type=jnp.float32)
    o_ref[...] = (acc + b_ref[...]).astype(o_ref.dtype)


def linear_pallas(x, weight_t_padded, bias_padded, out_features):
    """torch.nn.Linear semantics: y = x @ weight.T + bias.

    x:               (B, K) float32, passed as-is (no host-side padding)
    weight_t_padded: (K, F_pad) float32, F_pad = round_up(f, 128), padded cols zero
    bias_padded:     (1, F_pad) float32, padded entries zero
    returns:         (B, out_features) float32
    """
    B, K = x.shape
    K_w, F_pad = weight_t_padded.shape
    assert K == K_w, "in_features mismatch"
    assert F_pad % _LANE == 0, "padded feature dim must be lane-dense"

    # Tile sizes: big fixed batch tile (cdiv grid handles the ragged tail),
    # full feature extent when it comfortably fits, else 512-wide slabs.
    TB = min(_MAX_TB, _round_up(B, _SUBLANE))
    TF = F_pad if F_pad <= _MAX_TF else _MAX_TF
    grid_b = pl.cdiv(B, TB)
    grid_f = pl.cdiv(F_pad, TF)

    # v7x has 2 TensorCores sharded over "parallel" grid axes: expose at least
    # 2 blocks when possible so neither core idles (no effect on v5e/v6e).
    if grid_b * grid_f == 1:
        if B >= 2 * _SUBLANE:
            TB = _round_up((B + 1) // 2, _SUBLANE)
            grid_b = pl.cdiv(B, TB)
        elif F_pad >= 256 and F_pad % 256 == 0:
            TF = F_pad // 2
            grid_f = 2

    out = pl.pallas_call(
        _linear_kernel,
        # Output at its true width: Pallas masks the partial stores of the
        # last feature/batch blocks, so no padded-column write traffic and no
        # post-kernel slice pass.
        out_shape=jax.ShapeDtypeStruct((B, out_features), x.dtype),
        # Feature axis OUTER (slow): weight/bias block index changes only
        # grid_f times, so they are DMA'd once per feature block (once total
        # when grid_f == 1) and stay resident while the batch axis sweeps.
        grid=(grid_f, grid_b),
        in_specs=[
            pl.BlockSpec((TB, K), lambda fi, bi: (bi, 0)),   # x tile
            pl.BlockSpec((K, TF), lambda fi, bi: (0, fi)),   # weight (K, F) lane-dense
            pl.BlockSpec((1, TF), lambda fi, bi: (0, fi)),   # bias
        ],
        out_specs=pl.BlockSpec((TB, TF), lambda fi, bi: (bi, fi)),
        compiler_params=pltpu.CompilerParams(
            dimension_semantics=("parallel", "parallel"),
            # Raise v5e's 16 MiB scoped default; keep well under v7x's 64 MiB.
            vmem_limit_bytes=48 * 1024 * 1024,
        ),
    )(x, weight_t_padded, bias_padded)

    return out


class MLPPallas:
    """JAX/Pallas port of the PyTorch MLP (only layer1 participates in forward)."""

    IN_FEATURES = IN_FEATURES

    def __init__(self, p, f, key):
        self.p = p
        self.f = f
        in_features = self.IN_FEATURES
        k_w, k_b = jax.random.split(key)
        # Deterministic init mimicking nn.Linear's uniform(-1/sqrt(fan_in), +)
        bound = 1.0 / jnp.sqrt(in_features)
        # PyTorch layout (f, 12) kept only for reference checks.
        self.layer1_weight = jax.random.uniform(
            k_w, (f, in_features), dtype=jnp.float32, minval=-bound, maxval=bound
        )
        self.layer1_bias = jax.random.uniform(
            k_b, (f,), dtype=jnp.float32, minval=-bound, maxval=bound
        )
        # One-time transform (NOT per forward call): transpose to (K, F) and
        # pad F to a lane multiple with zeros so results are exact.
        f_pad = _round_up(f, _LANE)
        self._weight_t_padded = jnp.pad(
            self.layer1_weight.T, ((0, 0), (0, f_pad - f))
        )                                                        # (12, F_pad)
        self._bias_padded = jnp.pad(self.layer1_bias, (0, f_pad - f)).reshape(
            1, f_pad
        )                                                        # (1, F_pad)
        # TODO(synk): stodim/layer/rnn/rnn1/getRNNNE/ReLUs are defined in the
        # PyTorch __init__ but never used in forward(); intentionally not ported.

    def forward(self, x):
        return linear_pallas(x, self._weight_t_padded, self._bias_padded, self.f)


if __name__ == "__main__":
    key = jax.random.PRNGKey(0)
    k1m, k1x, k2m, k2x, k3m, k3x = jax.random.split(key, 6)
    p_arg = 3

    # --- Test 1: shapes implied by the original script (K=12, small batch) ---
    f1, b1 = 32, 8
    model1 = MLPPallas(p_arg, f1, k1m)
    x1 = jax.random.normal(k1x, (b1, IN_FEATURES), dtype=jnp.float32)
    y1 = jax.block_until_ready(model1.forward(x1))
    y1_ref = x1 @ model1.layer1_weight.T + model1.layer1_bias
    assert y1.shape == (b1, f1)
    assert jnp.allclose(y1, y1_ref, atol=1e-5, rtol=1e-5)

    # --- Test 2: ragged batch tail + 2-way batch grid split (v7x path) ---
    f2, b2 = 300, 24
    model2 = MLPPallas(p_arg, f2, k2m)
    x2 = jax.random.normal(k2x, (b2, IN_FEATURES), dtype=jnp.float32)
    y2 = jax.block_until_ready(model2.forward(x2))
    y2_ref = x2 @ model2.layer1_weight.T + model2.layer1_bias
    assert y2.shape == (b2, f2)
    assert jnp.allclose(y2, y2_ref, atol=1e-5, rtol=1e-5)

    # --- Test 3: feature-tiled path (F_pad > 512) with masked feature tail ---
    f3, b3 = 700, 40
    model3 = MLPPallas(p_arg, f3, k3m)
    x3 = jax.random.normal(k3x, (b3, IN_FEATURES), dtype=jnp.float32)
    y3 = jax.block_until_ready(model3.forward(x3))
    y3_ref = x3 @ model3.layer1_weight.T + model3.layer1_bias
    assert y3.shape == (b3, f3)
    assert jnp.allclose(y3, y3_ref, atol=1e-5, rtol=1e-5)

    print("KERNEL_OK")
</pallas_src>

<mosaic_0001>
module attributes {stable_mosaic.version = 11 : i64} {
  func.func @_linear_kernel(%arg0: i32, %arg1: i32, %arg2: memref<8x12xf32, #tpu.memory_space<vmem>>, %arg3: memref<12x128xf32, #tpu.memory_space<vmem>>, %arg4: memref<1x128xf32, #tpu.memory_space<vmem>>, %arg5: memref<8x128xf32, #tpu.memory_space<vmem>>) attributes {dimension_semantics = [#tpu.dimension_semantics<parallel>, #tpu.dimension_semantics<parallel>], iteration_bounds = array<i64: 1, 1>, scalar_prefetch = 0 : i64, scratch_operands = 0 : i64, tpu.core_type = #tpu.core_type<tc>, window_params = [{transform_indices = @transform_0, window_bounds = array<i64: 8, 12>}, {transform_indices = @transform_1, window_bounds = array<i64: 12, 128>}, {transform_indices = @transform_2, window_bounds = array<i64: 1, 128>}, {transform_indices = @transform_3, window_bounds = array<i64: 8, 128>}]} {
    %c0 = arith.constant 0 : index
    %c0_0 = arith.constant 0 : index
    %0 = vector.load %arg2[%c0, %c0_0] : memref<8x12xf32, #tpu.memory_space<vmem>>, vector<8x12xf32>
    %c0_1 = arith.constant 0 : index
    %c0_2 = arith.constant 0 : index
    %1 = vector.load %arg3[%c0_1, %c0_2] : memref<12x128xf32, #tpu.memory_space<vmem>>, vector<12x128xf32>
    %cst = arith.constant dense<0.000000e+00> : vector<8x128xf32>
    %2 = tpu.matmul %0, %1, %cst {dimension_numbers = #tpu.dot_dimension_numbers<[1], [0], [0], [1], [0, 0, 1, 1], [], []>} : vector<8x12xf32>, vector<12x128xf32>, vector<8x128xf32> -> vector<8x128xf32>
    %c0_3 = arith.constant 0 : index
    %c0_4 = arith.constant 0 : index
    %3 = vector.load %arg4[%c0_3, %c0_4] : memref<1x128xf32, #tpu.memory_space<vmem>>, vector<1x128xf32>
    %4 = vector.broadcast %3 : vector<1x128xf32> to vector<8x128xf32>
    %5 = arith.addf %2, %4 : vector<8x128xf32>
    %c0_5 = arith.constant 0 : index
    %c0_6 = arith.constant 0 : index
    %6 = vector.load %arg5[%c0_5, %c0_6] : memref<8x128xf32, #tpu.memory_space<vmem>>, vector<8x128xf32>
    tpu.vector_store %arg5[%c0_5, %c0_6], %5 {strides = array<i32>} : memref<8x128xf32, #tpu.memory_space<vmem>>, vector<8x128xf32>,
    return
  }
  func.func @transform_0(%arg0: i32, %arg1: i32) -> (i32, i32) {
    %c0_i32 = arith.constant 0 : i32
    %c0_i32_0 = arith.constant 0 : i32
    return %arg1, %c0_i32 : i32, i32
  }
  func.func @transform_1(%arg0: i32, %arg1: i32) -> (i32, i32) {
    %c0_i32 = arith.constant 0 : i32
    %c0_i32_0 = arith.constant 0 : i32
    return %c0_i32, %arg0 : i32, i32
  }
  func.func @transform_2(%arg0: i32, %arg1: i32) -> (i32, i32) {
    %c0_i32 = arith.constant 0 : i32
    %c0_i32_0 = arith.constant 0 : i32
    return %c0_i32, %arg0 : i32, i32
  }
  func.func @transform_3(%arg0: i32, %arg1: i32) -> (i32, i32) {
    %c0_i32 = arith.constant 0 : i32
    return %arg1, %arg0 : i32, i32
  }
}

</mosaic_0001>

<llo_original>
// kernel: tpu_custom_call.1
$region0: #{tpu_custom_call.1}
  #allocation0 [shape = 'u32[]', space=smem, size = 0x4, offset = 0x4, fixed_abs, tag = 'smem constant byte address 0x4 - core index']
  #allocation1 [shape = 'u32[144,128]{1,0:T(1,128)}', space=vmem, size = 0x12000, scoped, tag = 'internal scratch']
  %s0 = inlined_call_operand.hbm [shape: f32[8,12], index: 0, kind: input, shape index: {}]
  %s1 = inlined_call_operand.hbm [shape: f32[12,128], index: 1, kind: input, shape index: {}]
  %s2 = inlined_call_operand.vmem [shape: f32[1,128], index: 2, kind: input, shape index: {}]
  %s3 = inlined_call_operand.hbm [shape: f32[8,32], index: 3, kind: output, shape index: {}]
  %s4 = sld [smem:[#allocation0]]
  $region30: #{tpu_custom_call.1} parent=0
    _
  %s6 = ssub.s32 1, %s4
  %s7 = scalar_select 0, %s6, %s4
  $region1: #{tpu_custom_call.1} parent=0
    #allocation2 [shape = 'u8[4096]{0}', space=vmem, size = 0x1000, scoped, tag = 'input window, operand 0, single buffered']
    #allocation3 [shape = 's32[1]{0}', space=sflag, size = 0x4, scoped, tag = 'scoped memory for tpu_custom_call.1']
    #allocation4 [shape = 's32[1]{0}', space=sflag, size = 0x4, scoped, tag = 'scoped memory for tpu_custom_call.1']
    #allocation5 [shape = 'u8[8192]{0}', space=vmem, size = 0x2000, scoped, tag = 'input window, operand 1, single buffered']
    #allocation6 [shape = 's32[1]{0}', space=sflag, size = 0x4, scoped, tag = 'scoped memory for tpu_custom_call.1']
    #allocation7 [shape = 'u8[4096]{0}', space=vmem, size = 0x1000, scoped, tag = 'output window, operand 0, single buffered']
    %8 = vsyncpa [#allocation3], 0
    %9 = vsyncpa [#allocation6], 0
    %10 = vsyncpa [#allocation4], 0
    // Predicated region
    $region2: #{tpu_custom_call.1} parent=1 // pred_check
      _
    $region3: #{tpu_custom_call.1} parent=1 // pred_check_branch
      %12 = sbr.rel (0) target = $region5
    $region4: #{tpu_custom_call.1} parent=1 // pred_region
      %s14 = ssub.s32 128, 128
      %15 = vsyncadd [#allocation3], %s14
      %s17 = sshll.u32 [#allocation2], 4
      %s18 = int_to_ptr.vmem [resolvable:$true] %s17
      %20 = dma.hbm_to_vmem [thread:$0]  %s0, 128, %s18, [#allocation3]
    $region5: #{tpu_custom_call.1} parent=1 // pred_fallthru
      _
    // Predicated region
    $region6: #{tpu_custom_call.1} parent=1 // pred_check
      _
    $region7: #{tpu_custom_call.1} parent=1 // pred_check_branch
      %22 = sbr.rel (0) target = $region9
    $region8: #{tpu_custom_call.1} parent=1 // pred_region
      %s24 = ssub.s32 256, 256
      %25 = vsyncadd [#allocation6], %s24
      %s26 = sshll.u32 [#allocation5], 4
      %s27 = int_to_ptr.vmem [resolvable:$true] %s26
      %32 = dma.hbm_to_vmem [thread:$0]  %s1, 256, %s27, [#allocation6], 128, 128, 8
    $region9: #{tpu_custom_call.1} parent=1 // pred_fallthru
      _
    // Predicated region
    $region10: #{tpu_custom_call.1} parent=1 // pred_check
      _
    $region11: #{tpu_custom_call.1} parent=1 // pred_check_branch
      %34 = sbr.rel (0) target = $region13
    $region12: #{tpu_custom_call.1} parent=1 // pred_region
      _
    $region13: #{tpu_custom_call.1} parent=1 // pred_fallthru
      _
    // Predicated region
    $region14: #{tpu_custom_call.1} parent=1 // pred_check
      _
    $region15: #{tpu_custom_call.1} parent=1 // pred_check_branch
      %36 = sbr.rel (0) target = $region17
    $region16: #{tpu_custom_call.1} parent=1 // pred_region
      %37 = dma.done [#allocation3], 128
    $region17: #{tpu_custom_call.1} parent=1 // pred_fallthru
      _
    // Predicated region
    $region18: #{tpu_custom_call.1} parent=1 // pred_check
      _
    $region19: #{tpu_custom_call.1} parent=1 // pred_check_branch
      %39 = sbr.rel (0) target = $region21
    $region20: #{tpu_custom_call.1} parent=1 // pred_region
      %40 = dma.done [#allocation6], 256
    $region21: #{tpu_custom_call.1} parent=1 // pred_fallthru
      _
    %v41 = vld [vmem:[#allocation2] sm:$0xff]
    %v42 = vld [vmem:[#allocation5] sm:$0xff]
    %v43 = vld [vmem:[#allocation5 + $0x8] sm:$0xf]
    %v44 = vld [vmem:[%s2] sm:$0x1]
    %v46 = vlaneseq
    %v47 = vshrl.u32 %v46, 7
    %v48 = vsub.s32 0, %v47
    %v49 = vrot.slane %v44, %v48
    %vm51 = vcmask 97280
    %v53 = vsel %vm51, %v41, 0
    %vm55 = vcmask 1043456
    %v57 = vsel %vm55, %v43, 0
    %59 = vmatprep.subr.mxu0 0.0
    %60 = vmatpush1.msra.mxu0 0.0
    %61 = vmatprep.subr.mxu0 0.0
    %62 = vmatpush1.msra.mxu0 0.0
    %63 = vmatprep.subr.mxu0 0.0
    %64 = vmatpush1.msra.mxu0 0.0
    %65 = vmatprep.subr.mxu0 0.0
    %66 = vmatpush1.msra.mxu0 0.0
    %67 = vmatprep.subr.mxu0 0.0
    %68 = vmatpush1.msra.mxu0 0.0
    %69 = vmatprep.subr.mxu0 0.0
    %70 = vmatpush1.msra.mxu0 0.0
    %71 = vmatprep.subr.mxu0 0.0
    %72 = vmatpush1.msra.mxu0 0.0
    %73 = vmatprep.subr.mxu0 0.0
    %74 = vmatpush1.msra.mxu0 0.0
    %75 = vmatprep.subr.mxu0 0.0
    %76 = vmatpush1.msra.mxu0 0.0
    %77 = vmatprep.subr.mxu0 0.0
    %78 = vmatpush1.msra.mxu0 0.0
    %79 = vmatprep.subr.mxu0 0.0
    %80 = vmatpush1.msra.mxu0 0.0
    %81 = vmatprep.subr.mxu0 0.0
    %82 = vmatpush1.msra.mxu0 0.0
    %83 = vmatprep.subr.mxu0 0.0
    %84 = vmatpush1.msra.mxu0 0.0
    %85 = vmatprep.subr.mxu0 0.0
    %86 = vmatpush1.msra.mxu0 0.0
    %87 = vmatprep.subr.mxu0 0.0
    %88 = vmatpush1.msra.mxu0 %v57
    %89 = vmatprep.subr.mxu0 0.0
    %90 = vmatpush1.msra.mxu0 %v42
    %91 = vmatprep.subr.mxu0 0.0
    %92 = vmatpush2.msra.mxu0 0.0
    %93 = vmatprep.subr.mxu0 0.0
    %94 = vmatpush2.msra.mxu0 0.0
    %95 = vmatprep.subr.mxu0 0.0
    %96 = vmatpush2.msra.mxu0 0.0
    %97 = vmatprep.subr.mxu0 0.0
    %98 = vmatpush2.msra.mxu0 0.0
    %99 = vmatprep.subr.mxu0 0.0
    %100 = vmatpush2.msra.mxu0 0.0
    %101 = vmatprep.subr.mxu0 0.0
    %102 = vmatpush2.msra.mxu0 0.0
    %103 = vmatprep.subr.mxu0 0.0
    %104 = vmatpush2.msra.mxu0 0.0
    %105 = vmatprep.subr.mxu0 0.0
    %106 = vmatpush2.msra.mxu0 0.0
    %107 = vmatprep.subr.mxu0 0.0
    %108 = vmatpush2.msra.mxu0 0.0
    %109 = vmatprep.subr.mxu0 0.0
    %110 = vmatpush2.msra.mxu0 0.0
    %111 = vmatprep.subr.mxu0 0.0
    %112 = vmatpush2.msra.mxu0 0.0
    %113 = vmatprep.subr.mxu0 0.0
    %114 = vmatpush2.msra.mxu0 0.0
    %115 = vmatprep.subr.mxu0 0.0
    %116 = vmatpush2.msra.mxu0 0.0
    %117 = vmatprep.subr.mxu0 0.0
    %118 = vmatpush2.msra.mxu0 0.0
    %119 = vmatprep.subr.mxu0 0.0
    %120 = vmatpush2.msra.mxu0 0.0
    %121 = vmatprep.subr.mxu0 0.0
    %122 = vmatpush2.msra.mxu0 0.0
    %123 = vmatprep.mubr.f32.mxu0 0.0
    %124 = vmatmul.mubr.f32.gmra.mxu0 %v53
    %v125 = vpop.f32.mrf.mxu0
    %v126 = vadd.f32 %v49, %v125
    %v127 = vpop.f32.mrf.mxu0
    %128 = vdwg.mxu0
    %129 = vst [vmem:[#allocation7] sm:$0xff] %v126
    // Predicated region
    $region22: #{tpu_custom_call.1} parent=1 // pred_check
      _
    $region23: #{tpu_custom_call.1} parent=1 // pred_check_branch
      %131 = sbr.rel (0) target = $region25
    $region24: #{tpu_custom_call.1} parent=1 // pred_region
      %s133 = ssub.s32 128, 128
      %134 = vsyncadd [#allocation4], %s133
      %s136 = sshll.u32 [#allocation7], 4
      %s137 = int_to_ptr.vmem [resolvable:$true] %s136
      %139 = dma.vmem_to_hbm [thread:$0]  %s137, 128, %s3, [#allocation4]
    $region25: #{tpu_custom_call.1} parent=1 // pred_fallthru
      _
    // Predicated region
    $region26: #{tpu_custom_call.1} parent=1 // pred_check
      _
    $region27: #{tpu_custom_call.1} parent=1 // pred_check_branch
      %141 = sbr.rel (0) target = $region29
    $region28: #{tpu_custom_call.1} parent=1 // pred_region
      %142 = dma.done [#allocation4], 128
    $region29: #{tpu_custom_call.1} parent=1 // pred_fallthru
      _
    %143 = vsyncpa [#allocation3], 1
    %144 = vsyncpa [#allocation6], 1
    %145 = vsyncpa [#allocation4], 1

</llo_original>
